<compile_context>
chip_gen: v7x
topology: tpu7x:2x2x1
jax: 0.10.0
libtpu: 0.0.40
codegen_flags: <defaults>
</compile_context>

<pallas_src>
import jax
import jax.numpy as jnp
from jax import lax
from jax.experimental import pallas as pl
from jax.experimental.pallas import tpu as pltpu

_NUM_CLASSES = 2


def _head_kernel(x_ref, wt_ref, b_ref, yw_ref, prob_t_ref, lterm_ref):
    # x:  (TB, H)  bf16   pooled encoder features (tile of the batch)
    # wt: (2, H)   bf16   PyTorch-layout weight (out_features, in_features)
    # b:  SMEM (2,) f32   bias scalars
    # yw: (2, TB)  f32    row 0 = labels, row 1 = valid-mask (0 for padding)
    x = x_ref[...]
    wt = wt_ref[...]

    # logits^T = W @ x^T : contract the hidden (lane) dim of both operands on
    # the MXU with f32 accumulation (same pattern as attention QK^T).
    zt = lax.dot_general(
        wt, x,
        dimension_numbers=(((1,), (1,)), ((), ())),
        preferred_element_type=jnp.float32)            # (2, TB) f32

    z0 = zt[0:1, :] + b_ref[0]                          # (1, TB)
    z1 = zt[1:2, :] + b_ref[1]                          # (1, TB)

    # Numerically stable sigmoid: one exp + one reciprocal per row (EUP),
    # select/mul on the VPU.
    e0 = jnp.exp(-jnp.abs(z0))
    inv0 = 1.0 / (1.0 + e0)
    prob0 = jnp.where(z0 >= 0.0, inv0, e0 * inv0)

    e1 = jnp.exp(-jnp.abs(z1))
    inv1 = 1.0 / (1.0 + e1)
    prob1 = jnp.where(z1 >= 0.0, inv1, e1 * inv1)

    prob_t_ref[0:1, :] = prob0.astype(prob_t_ref.dtype)
    prob_t_ref[1:2, :] = prob1.astype(prob_t_ref.dtype)

    y = yw_ref[0:1, :]
    valid = yw_ref[1:2, :]

    # BCE from logits:  y*(-log p0) + (1-y)*(-log(1-p0)) = softplus(z0) - y*z0
    # (stable softplus reuses e0 = exp(-|z0|); log argument is in (1, 2]).
    softplus_z0 = jnp.maximum(z0, 0.0) + jnp.log(1.0 + e0)
    lterm_ref[...] = (softplus_z0 - y * z0) * valid


def _choose_tiling(batch):
    """Pick (tile_rows, padded_batch) satisfying the (8,128) block rules."""
    if batch <= 1024:
        b_pad = max(8, ((batch + 7) // 8) * 8)
        return b_pad, b_pad                       # single block == full array
    tb = 1024   # multiple of 8 and 128; 2 bufs * 1024*768*bf16 = 3 MiB << VMEM
    b_pad = ((batch + tb - 1) // tb) * tb
    return tb, b_pad


def classifier_head(x, weight, bias, labels=None):
    """Classifier head on pooled encoder output.

    x:      (B, H=768) pooled encoder features (kept / cast to bf16).
    weight: (2, 768)   PyTorch nn.Linear layout (out_features, in_features).
    bias:   (2,)
    labels: optional (B,) {0,1}.
    Returns (loss, prob) if labels is given, else prob.  prob is (B, 2) f32.
    """
    batch, hidden = x.shape
    tb, b_pad = _choose_tiling(batch)
    n_blocks = b_pad // tb

    # Keep the (large) feature matrix in bf16 on the wire: halves HBM->VMEM
    # bytes and feeds the MXU natively.  Only tiny operands are touched here.
    x_bf = x if x.dtype == jnp.bfloat16 else x.astype(jnp.bfloat16)
    if b_pad != batch:
        x_bf = jnp.pad(x_bf, ((0, b_pad - batch), (0, 0)))

    w_bf = weight.astype(jnp.bfloat16)                 # (2, 768) lane-dense
    b_f32 = bias.astype(jnp.float32)                   # (2,) -> SMEM scalars

    y = (jnp.zeros((batch,), jnp.float32) if labels is None
         else labels.astype(jnp.float32))
    valid = jnp.ones((batch,), jnp.float32)
    yw = jnp.stack([y, valid], axis=0)                 # (2, B) lane-dense
    if b_pad != batch:
        yw = jnp.pad(yw, ((0, 0), (0, b_pad - batch)))

    # Advisory cost hint so XLA can overlap this tiny epilogue with the encoder.
    cost = pl.CostEstimate(
        flops=2 * b_pad * hidden * _NUM_CLASSES,
        transcendentals=4 * b_pad,
        bytes_accessed=(x_bf.size * 2 + w_bf.size * 2 + yw.size * 4
                        + b_pad * _NUM_CLASSES * 4 + b_pad * 4 + 8),
    )

    prob_t, lterms = pl.pallas_call(
        _head_kernel,
        out_shape=(
            jax.ShapeDtypeStruct((_NUM_CLASSES, b_pad), jnp.float32),  # prob^T
            jax.ShapeDtypeStruct((1, b_pad), jnp.float32),             # BCE terms
        ),
        grid_spec=pltpu.PrefetchScalarGridSpec(
            num_scalar_prefetch=0,
            grid=(n_blocks,),
            in_specs=[
                pl.BlockSpec((tb, hidden), lambda i: (i, 0)),             # x tile
                pl.BlockSpec((_NUM_CLASSES, hidden), lambda i: (0, 0)),   # W (resident)
                pl.BlockSpec(memory_space=pltpu.MemorySpace.SMEM),        # bias
                pl.BlockSpec((_NUM_CLASSES, tb), lambda i: (0, i)),       # labels/mask
            ],
            out_specs=(
                pl.BlockSpec((_NUM_CLASSES, tb), lambda i: (0, i)),       # prob^T
                pl.BlockSpec((1, tb), lambda i: (0, i)),                  # loss terms
            ),
        ),
        compiler_params=pltpu.CompilerParams(
            dimension_semantics=("parallel",)),
        cost_estimate=cost,
    )(x_bf, w_bf, b_f32, yw)

    prob = prob_t.T[:batch]                            # (B, 2)
    if labels is None:
        return prob
    loss = jnp.sum(lterms) * (1.0 / batch)             # padding rows masked to 0
    return loss, prob


def reference(x, weight, bias, labels):
    """Pure-JAX reference matching the PyTorch module (eps-hack loss)."""
    x32 = x.astype(jnp.float32)
    w32 = weight.astype(jnp.float32)
    logits = x32 @ w32.T + bias.astype(jnp.float32)
    prob = jax.nn.sigmoid(logits)
    y = labels.astype(jnp.float32)
    per = (jnp.log(prob[:, 0] + 1e-10) * y
           + jnp.log(1.0 - prob[:, 0] + 1e-10) * (1.0 - y))
    return -per.mean(), prob


if __name__ == "__main__":
    key = jax.random.PRNGKey(0)
    k_x, k_w, k_b, k_y = jax.random.split(key, 4)

    B, H = 8, 768  # batch, hidden (Linear(768, 2) fixes H=768)

    # Stand-in for encoder pooler_output / last-eos hidden state (native bf16).
    x = jax.random.normal(k_x, (B, H), dtype=jnp.float32).astype(jnp.bfloat16)

    # Deterministic nn.Linear(768, 2)-style init: uniform(-1/sqrt(H), 1/sqrt(H)).
    bound = 1.0 / jnp.sqrt(jnp.float32(H))
    weight = jax.random.uniform(k_w, (2, H), jnp.float32, -bound, bound)  # (out, in)
    bias = jax.random.uniform(k_b, (2,), jnp.float32, -bound, bound)
    labels = jax.random.bernoulli(k_y, 0.5, (B,)).astype(jnp.float32)

    loss, prob = classifier_head(x, weight, bias, labels)
    jax.block_until_ready((loss, prob))

    # Compare against the pure-JAX reference (using bf16-rounded weights so the
    # comparison is apples-to-apples with the MXU's bf16 operands).
    loss_ref, prob_ref = reference(x, weight.astype(jnp.bfloat16), bias, labels)
    assert prob.shape == (B, 2)
    assert jnp.allclose(prob, prob_ref, atol=2e-3), "prob mismatch"
    assert jnp.allclose(loss, loss_ref, atol=2e-3), "loss mismatch"

    # Also exercise the padding / valid-mask path (B not a multiple of 8).
    B2 = 5
    x2 = x[:B2]
    labels2 = labels[:B2]
    loss2, prob2 = classifier_head(x2, weight, bias, labels2)
    jax.block_until_ready((loss2, prob2))
    loss2_ref, prob2_ref = reference(x2, weight.astype(jnp.bfloat16), bias, labels2)
    assert prob2.shape == (B2, 2)
    assert jnp.allclose(prob2, prob2_ref, atol=2e-3), "prob mismatch (padded)"
    assert jnp.allclose(loss2, loss2_ref, atol=2e-3), "loss mismatch (padded)"

    print("KERNEL_OK")
</pallas_src>

<mosaic_0001>
module attributes {stable_mosaic.version = 11 : i64} {
  func.func @_head_kernel(%arg0: i32, %arg1: memref<8x768xbf16, #tpu.memory_space<vmem>>, %arg2: memref<2x768xbf16, #tpu.memory_space<vmem>>, %arg3: memref<2xf32, #tpu.memory_space<smem>>, %arg4: memref<2x8xf32, #tpu.memory_space<vmem>>, %arg5: memref<2x8xf32, #tpu.memory_space<vmem>>, %arg6: memref<1x8xf32, #tpu.memory_space<vmem>>) attributes {dimension_semantics = [#tpu.dimension_semantics<parallel>], iteration_bounds = array<i64: 1>, scalar_prefetch = 0 : i64, scratch_operands = 0 : i64, tpu.core_type = #tpu.core_type<tc>, window_params = [{transform_indices = @transform_0, window_bounds = array<i64: 8, 768>}, {pipeline_mode = #tpu.pipeline_mode<synchronous>, transform_indices = @transform_1, window_bounds = array<i64: 2, 768>}, {transform_indices = @transform_2, window_bounds = array<i64: 2>}, {transform_indices = @transform_3, window_bounds = array<i64: 2, 8>}, {transform_indices = @transform_4, window_bounds = array<i64: 2, 8>}, {transform_indices = @transform_5, window_bounds = array<i64: 1, 8>}]} {
    %c0 = arith.constant 0 : index
    %c0_0 = arith.constant 0 : index
    %0 = vector.load %arg1[%c0, %c0_0] : memref<8x768xbf16, #tpu.memory_space<vmem>>, vector<8x768xbf16>
    %c0_1 = arith.constant 0 : index
    %c0_2 = arith.constant 0 : index
    %1 = vector.load %arg2[%c0_1, %c0_2] : memref<2x768xbf16, #tpu.memory_space<vmem>>, vector<2x768xbf16>
    %cst = arith.constant dense<0.000000e+00> : vector<2x8xf32>
    %2 = tpu.matmul %1, %0, %cst {dimension_numbers = #tpu.dot_dimension_numbers<[1], [1], [0], [0], [0, 0, 1, 0], [], []>} : vector<2x768xbf16>, vector<8x768xbf16>, vector<2x8xf32> -> vector<2x8xf32>
    %3 = vector.extract_strided_slice %2 {offsets = [0, 0], sizes = [1, 8], strides = [1, 1]} : vector<2x8xf32> to vector<1x8xf32>
    %c0_3 = arith.constant 0 : index
    %4 = memref.load %arg3[%c0_3] : memref<2xf32, #tpu.memory_space<smem>>
    %5 = vector.broadcast %4 : f32 to vector<1x8xf32>
    %6 = arith.addf %3, %5 : vector<1x8xf32>
    %7 = vector.extract_strided_slice %2 {offsets = [1, 0], sizes = [1, 8], strides = [1, 1]} : vector<2x8xf32> to vector<1x8xf32>
    %c1 = arith.constant 1 : index
    %8 = memref.load %arg3[%c1] : memref<2xf32, #tpu.memory_space<smem>>
    %9 = vector.broadcast %8 : f32 to vector<1x8xf32>
    %10 = arith.addf %7, %9 : vector<1x8xf32>
    %11 = math.absf %6 : vector<1x8xf32>
    %cst_4 = arith.constant 0.000000e+00 : f32
    %12 = vector.broadcast %cst_4 : f32 to vector<1x8xf32>
    %13 = arith.subf %12, %11 : vector<1x8xf32>
    %14 = math.exp %13 : vector<1x8xf32>
    %cst_5 = arith.constant 1.000000e+00 : f32
    %15 = vector.broadcast %cst_5 : f32 to vector<1x8xf32>
    %16 = arith.addf %15, %14 : vector<1x8xf32>
    %cst_6 = arith.constant 1.000000e+00 : f32
    %17 = vector.broadcast %cst_6 : f32 to vector<1x8xf32>
    %18 = arith.divf %17, %16 : vector<1x8xf32>
    %cst_7 = arith.constant 0.000000e+00 : f32
    %19 = vector.broadcast %cst_7 : f32 to vector<1x8xf32>
    %20 = arith.cmpf oge, %6, %19 : vector<1x8xf32>
    %21 = arith.mulf %14, %18 : vector<1x8xf32>
    %22 = arith.select %20, %18, %21 : vector<1x8xi1>, vector<1x8xf32>
    %23 = math.absf %10 : vector<1x8xf32>
    %cst_8 = arith.constant 0.000000e+00 : f32
    %24 = vector.broadcast %cst_8 : f32 to vector<1x8xf32>
    %25 = arith.subf %24, %23 : vector<1x8xf32>
    %26 = math.exp %25 : vector<1x8xf32>
    %cst_9 = arith.constant 1.000000e+00 : f32
    %27 = vector.broadcast %cst_9 : f32 to vector<1x8xf32>
    %28 = arith.addf %27, %26 : vector<1x8xf32>
    %cst_10 = arith.constant 1.000000e+00 : f32
    %29 = vector.broadcast %cst_10 : f32 to vector<1x8xf32>
    %30 = arith.divf %29, %28 : vector<1x8xf32>
    %cst_11 = arith.constant 0.000000e+00 : f32
    %31 = vector.broadcast %cst_11 : f32 to vector<1x8xf32>
    %32 = arith.cmpf oge, %10, %31 : vector<1x8xf32>
    %33 = arith.mulf %26, %30 : vector<1x8xf32>
    %34 = arith.select %32, %30, %33 : vector<1x8xi1>, vector<1x8xf32>
    %c0_12 = arith.constant 0 : index
    %c0_13 = arith.constant 0 : index
    %35 = vector.load %arg5[%c0_12, %c0_13] : memref<2x8xf32, #tpu.memory_space<vmem>>, vector<1x8xf32>
    tpu.vector_store %arg5[%c0_12, %c0_13], %22 {strides = array<i32>} : memref<2x8xf32, #tpu.memory_space<vmem>>, vector<1x8xf32>,
    %c1_14 = arith.constant 1 : index
    %c0_15 = arith.constant 0 : index
    %36 = vector.load %arg5[%c1_14, %c0_15] : memref<2x8xf32, #tpu.memory_space<vmem>>, vector<1x8xf32>
    tpu.vector_store %arg5[%c1_14, %c0_15], %34 {strides = array<i32>} : memref<2x8xf32, #tpu.memory_space<vmem>>, vector<1x8xf32>,
    %c0_16 = arith.constant 0 : index
    %c0_17 = arith.constant 0 : index
    %37 = vector.load %arg4[%c0_16, %c0_17] : memref<2x8xf32, #tpu.memory_space<vmem>>, vector<1x8xf32>
    %c1_18 = arith.constant 1 : index
    %c0_19 = arith.constant 0 : index
    %38 = vector.load %arg4[%c1_18, %c0_19] : memref<2x8xf32, #tpu.memory_space<vmem>>, vector<1x8xf32>
    %cst_20 = arith.constant 0.000000e+00 : f32
    %39 = vector.broadcast %cst_20 : f32 to vector<1x8xf32>
    %40 = arith.maximumf %6, %39 : vector<1x8xf32>
    %cst_21 = arith.constant 1.000000e+00 : f32
    %41 = vector.broadcast %cst_21 : f32 to vector<1x8xf32>
    %42 = arith.addf %41, %14 : vector<1x8xf32>
    %43 = math.log %42 : vector<1x8xf32>
    %44 = arith.addf %40, %43 : vector<1x8xf32>
    %45 = arith.mulf %37, %6 : vector<1x8xf32>
    %46 = arith.subf %44, %45 : vector<1x8xf32>
    %47 = arith.mulf %46, %38 : vector<1x8xf32>
    %c0_22 = arith.constant 0 : index
    %c0_23 = arith.constant 0 : index
    %48 = vector.load %arg6[%c0_22, %c0_23] : memref<1x8xf32, #tpu.memory_space<vmem>>, vector<1x8xf32>
    tpu.vector_store %arg6[%c0_22, %c0_23], %47 {strides = array<i32>} : memref<1x8xf32, #tpu.memory_space<vmem>>, vector<1x8xf32>,
    return
  }
  func.func @transform_0(%arg0: i32) -> (i32, i32) {
    %c0_i32 = arith.constant 0 : i32
    %c0_i32_0 = arith.constant 0 : i32
    return %arg0, %c0_i32 : i32, i32
  }
  func.func @transform_1(%arg0: i32) -> (i32, i32) {
    %c0_i32 = arith.constant 0 : i32
    %c0_i32_0 = arith.constant 0 : i32
    %c0_i32_1 = arith.constant 0 : i32
    return %c0_i32, %c0_i32_0 : i32, i32
  }
  func.func @transform_2(%arg0: i32) -> i32 {
    %c0_i32 = arith.constant 0 : i32
    %c0_i32_0 = arith.constant 0 : i32
    return %c0_i32 : i32
  }
  func.func @transform_3(%arg0: i32) -> (i32, i32) {
    %c0_i32 = arith.constant 0 : i32
    %c0_i32_0 = arith.constant 0 : i32
    return %c0_i32, %arg0 : i32, i32
  }
  func.func @transform_4(%arg0: i32) -> (i32, i32) {
    %c0_i32 = arith.constant 0 : i32
    %c0_i32_0 = arith.constant 0 : i32
    return %c0_i32, %arg0 : i32, i32
  }
  func.func @transform_5(%arg0: i32) -> (i32, i32) {
    %c0_i32 = arith.constant 0 : i32
    %c0_i32_0 = arith.constant 0 : i32
    return %c0_i32, %arg0 : i32, i32
  }
}

</mosaic_0001>

<llo_original>
// kernel: tpu_custom_call.1
$region0: #{tpu_custom_call.1}
  #allocation0 [shape = 'u32[]', space=smem, size = 0x4, offset = 0x4, fixed_abs, tag = 'smem constant byte address 0x4 - core index']
  #allocation1 [shape = 'u32[144,128]{1,0:T(1,128)}', space=vmem, size = 0x12000, scoped, tag = 'internal scratch']
  %s0 = inlined_call_operand.hbm [shape: bf16[8,768], index: 0, kind: input, shape index: {}]
  %s1 = inlined_call_operand.hbm [shape: bf16[2,768], index: 1, kind: input, shape index: {}]
  %s2 = inlined_call_operand.vmem [shape: f32[2], index: 2, kind: input, shape index: {}]
  %s3 = inlined_call_operand.vmem [shape: f32[2,8], index: 3, kind: input, shape index: {}]
  %s4 = inlined_call_operand.hbm [shape: f32[2,8], index: 4, kind: output, shape index: {0}]
  %s5 = inlined_call_operand.hbm [shape: f32[1,8], index: 5, kind: output, shape index: {1}]
  %6 = xla_tuple %s4, %s5
  %s7 = sld [smem:[#allocation0]]
  $region46: #{tpu_custom_call.1} parent=0
    _
  %s9 = ssub.s32 1, %s7
  %s10 = scalar_select 0, %s9, %s7
  $region1: #{tpu_custom_call.1} parent=0
    #allocation2 [shape = 'u8[12288]{0}', space=vmem, size = 0x3000, scoped, tag = 'input window, operand 0, single buffered']
    #allocation3 [shape = 's32[1]{0}', space=sflag, size = 0x4, scoped, tag = 'scoped memory for tpu_custom_call.1']
    #allocation4 [shape = 's32[1]{0}', space=sflag, size = 0x4, scoped, tag = 'scoped memory for tpu_custom_call.1']
    #allocation5 [shape = 's32[1]{0}', space=sflag, size = 0x4, scoped, tag = 'scoped memory for tpu_custom_call.1']
    #allocation6 [shape = 'u8[3072]{0}', space=vmem, size = 0xc00, scoped, tag = 'input window, operand 1, single buffered']
    #allocation7 [shape = 's32[1]{0}', space=sflag, size = 0x4, scoped, tag = 'scoped memory for tpu_custom_call.1']
    #allocation8 [shape = 'u8[512]{0}', space=smem, size = 0x200, scoped, tag = 'input window, operand 2, single buffered']
    #allocation9 [shape = 'u8[1024]{0}', space=vmem, size = 0x400, scoped, tag = 'output window, operand 0, single buffered']
    #allocation10 [shape = 'u8[512]{0}', space=vmem, size = 0x400, scoped, tag = 'output window, operand 1, single buffered']
    #allocation11 [shape = 's32[1]{0}', space=sflag, size = 0x4, scoped, tag = 'scoped memory for tpu_custom_call.1']
    %11 = vsyncpa [#allocation3], 0
    %12 = vsyncpa [#allocation7], 0
    %13 = vsyncpa [#allocation5], 0
    %14 = vsyncpa [#allocation4], 0
    %15 = vsyncpa [#allocation11], 0
    // Predicated region
    $region2: #{tpu_custom_call.1} parent=1 // pred_check
      _
    $region3: #{tpu_custom_call.1} parent=1 // pred_check_branch
      %17 = sbr.rel (0) target = $region5
    $region4: #{tpu_custom_call.1} parent=1 // pred_region
      %s19 = ssub.s32 384, 384
      %20 = vsyncadd [#allocation3], %s19
      %s22 = sshll.u32 [#allocation2], 4
      %s23 = int_to_ptr.vmem [resolvable:$true] %s22
      %25 = dma.hbm_to_vmem [thread:$0]  %s0, 384, %s23, [#allocation3]
    $region5: #{tpu_custom_call.1} parent=1 // pred_fallthru
      _
    // Predicated region
    $region6: #{tpu_custom_call.1} parent=1 // pred_check
      _
    $region7: #{tpu_custom_call.1} parent=1 // pred_check_branch
      %27 = sbr.rel (0) target = $region9
    $region8: #{tpu_custom_call.1} parent=1 // pred_region
      %s29 = ssub.s32 96, 96
      %30 = vsyncadd [#allocation7], %s29
      %s32 = sshll.u32 [#allocation6], 4
      %s33 = int_to_ptr.vmem [resolvable:$true] %s32
      %35 = dma.hbm_to_vmem [thread:$0]  %s1, 96, %s33, [#allocation7]
    $region9: #{tpu_custom_call.1} parent=1 // pred_fallthru
      _
    // Predicated region
    $region10: #{tpu_custom_call.1} parent=1 // pred_check
      _
    $region11: #{tpu_custom_call.1} parent=1 // pred_check_branch
      %37 = sbr.rel (0) target = $region13
    $region12: #{tpu_custom_call.1} parent=1 // pred_region
      %s39 = ssub.s32 16, 16
      %40 = vsyncadd [#allocation5], %s39
      %s42 = sshll.u32 %s2, 4
      %s43 = int_to_ptr.vmem [resolvable:$true] %s42
      %45 = dma.vmem_to_smem %s43, 16, [#allocation8], [#allocation5]
    $region13: #{tpu_custom_call.1} parent=1 // pred_fallthru
      _
    // Predicated region
    $region14: #{tpu_custom_call.1} parent=1 // pred_check
      _
    $region15: #{tpu_custom_call.1} parent=1 // pred_check_branch
      %47 = sbr.rel (0) target = $region17
    $region16: #{tpu_custom_call.1} parent=1 // pred_region
      _
    $region17: #{tpu_custom_call.1} parent=1 // pred_fallthru
      _
    // Predicated region
    $region18: #{tpu_custom_call.1} parent=1 // pred_check
      _
    $region19: #{tpu_custom_call.1} parent=1 // pred_check_branch
      %49 = sbr.rel (0) target = $region21
    $region20: #{tpu_custom_call.1} parent=1 // pred_region
      %50 = dma.done [#allocation3], 384
    $region21: #{tpu_custom_call.1} parent=1 // pred_fallthru
      _
    // Predicated region
    $region22: #{tpu_custom_call.1} parent=1 // pred_check
      _
    $region23: #{tpu_custom_call.1} parent=1 // pred_check_branch
      %52 = sbr.rel (0) target = $region25
    $region24: #{tpu_custom_call.1} parent=1 // pred_region
      %53 = dma.done [#allocation7], 96
    $region25: #{tpu_custom_call.1} parent=1 // pred_fallthru
      _
    // Predicated region
    $region26: #{tpu_custom_call.1} parent=1 // pred_check
      _
    $region27: #{tpu_custom_call.1} parent=1 // pred_check_branch
      %55 = sbr.rel (0) target = $region29
    $region28: #{tpu_custom_call.1} parent=1 // pred_region
      %56 = dma.done [#allocation5], 16
    $region29: #{tpu_custom_call.1} parent=1 // pred_fallthru
      _
    %57 = sfence
    %v59 = vld [vmem:[#allocation2] sm:$0xff]
    %v60 = vld [vmem:[#allocation2 + $0x8] sm:$0xff]
    %v61 = vld [vmem:[#allocation2 + $0x10] sm:$0xff]
    %v62 = vld [vmem:[#allocation6] sm:$0x3f]
    %v64 = vcombine.high %v62, %v62
    %v66 = vunpack.c.l.s4 1966171168
    %v67 = vunpack.c.0.s8 %v66
    %v68 = vlaneseq
    %v69 = vshrl.u32 %v68, 7
    %v70 = vsub.s32 %v67, %v69
    %v71 = vrot.slane %v62, %v70
    %v73 = vunpack.c.l.s4 1966171168
    %v74 = vunpack.c.0.s8 %v73
    %v75 = vlaneseq
    %v76 = vshrl.u32 %v75, 7
    %v77 = vsub.s32 %v74, %v76
    %v78 = vrot.slane %v64, %v77
    %v79 = vcombine.high %v71, %v71
    %v80 = vcombine.high %v78, %v78
    %v82 = vunpack.c.l.s4 1966171168
    %v83 = vunpack.c.0.s8 %v82
    %v84 = vlaneseq
    %v85 = vshrl.u32 %v84, 7
    %v86 = vsub.s32 %v83, %v85
    %v87 = vrot.slane %v71, %v86
    %v89 = vunpack.c.l.s4 1966171168
    %v90 = vunpack.c.0.s8 %v89
    %v91 = vlaneseq
    %v92 = vshrl.u32 %v91, 7
    %v93 = vsub.s32 %v90, %v92
    %v94 = vrot.slane %v78, %v93
    %v96 = vunpack.c.l.s4 1966171168
    %v97 = vunpack.c.0.s8 %v96
    %v98 = vlaneseq
    %v99 = vshrl.u32 %v98, 7
    %v100 = vsub.s32 %v97, %v99
    %v101 = vrot.slane %v79, %v100
    %v103 = vunpack.c.l.s4 1966171168
    %v104 = vunpack.c.0.s8 %v103
    %v105 = vlaneseq
    %v106 = vshrl.u32 %v105, 7
    %v107 = vsub.s32 %v104, %v106
    %v108 = vrot.slane %v80, %v107
    %v109 = vcombine.high %v87, %v87
    %v110 = vcombine.high %v101, %v101
    %v120 = vunpack.c.l.b16 %v59
    %v121 = vunpack.c.h.b16 %v59
    %v122 = vunpack.c.l.b16 %v60
    %v123 = vunpack.c.h.b16 %v60
    %v124 = vunpack.c.l.b16 %v61
    %v125 = vunpack.c.h.b16 %v61
    %v126 = vpack.c.b16 %v120, %v120
    %v127 = vpack.c.b16 %v121, %v121
    %v128 = vpack.c.b16 %v122, %v122
    %v129 = vpack.c.b16 %v123, %v123
    %v130 = vpack.c.b16 %v124, %v124
    %v131 = vpack.c.b16 %v125, %v125
    %138 = vmatprep.subr.bf16.mxu0 %v127
    %139 = vmatpush1.bf16.xpose.msra.mxu0 %v126
    %140 = vmatprep.subr.bf16.mxu0 0
    %141 = vmatpush1.bf16.xpose.msra.mxu0 0
    %142 = vmatprep.subr.bf16.mxu0 0
    %143 = vmatpush1.bf16.xpose.msra.mxu0 0
    %144 = vmatprep.subr.bf16.mxu0 0
    %145 = vmatpush1.bf16.xpose.msra.mxu0 0
    %146 = vmatprep.subr.bf16.mxu0 0
    %147 = vmatpush1.bf16.xpose.msra.mxu0 0
    %148 = vmatprep.subr.bf16.mxu0 0
    %149 = vmatpush1.bf16.xpose.msra.mxu0 0
    %150 = vmatprep.subr.bf16.mxu0 0
    %151 = vmatpush1.bf16.xpose.msra.mxu0 0
    %152 = vmatprep.subr.bf16.mxu0 0
    %153 = vmatpush1.bf16.xpose.msra.mxu0 0
    %154 = vmatprep.subr.bf16.mxu0 0
    %155 = vmatpush1.bf16.xpose.msra.mxu0 0
    %156 = vmatprep.subr.bf16.mxu0 0
    %157 = vmatpush1.bf16.xpose.msra.mxu0 0
    %158 = vmatprep.subr.bf16.mxu0 0
    %159 = vmatpush1.bf16.xpose.msra.mxu0 0
    %160 = vmatprep.subr.bf16.mxu0 0
    %161 = vmatpush1.bf16.xpose.msra.mxu0 0
    %162 = vmatprep.subr.bf16.mxu0 0
    %163 = vmatpush1.bf16.xpose.msra.mxu0 0
    %164 = vmatprep.subr.bf16.mxu0 0
    %165 = vmatpush1.bf16.xpose.msra.mxu0 0
    %166 = vmatprep.subr.bf16.mxu0 0
    %167 = vmatpush1.bf16.xpose.msra.mxu0 0
    %168 = vmatprep.subr.bf16.mxu0 0
    %169 = vmatpush1.bf16.xpose.msra.mxu0 0
    %170 = vmatprep.mubr.bf16.mxu0 %v101
    %171 = vmatmul.mubr.bf16.gmra.mrb[0].mxu0 %v87
    %v172 = vpop.f32.mrb[0].mxu0
    %v173 = vadd.f32 0.0, %v172
    %v174 = vpop.f32.mrb[0].mxu0
    %v175 = vpop.f32.mrb[0].mxu0
    %v176 = vpop.f32.mrb[0].mxu0
    %177 = vdwg.mxu0
    %178 = vmatprep.subr.bf16.mxu0 %v129
    %179 = vmatpush1.bf16.xpose.msra.mxu0 %v128
    %180 = vmatprep.subr.bf16.mxu0 0
    %181 = vmatpush1.bf16.xpose.msra.mxu0 0
    %182 = vmatprep.subr.bf16.mxu0 0
    %183 = vmatpush1.bf16.xpose.msra.mxu0 0
    %184 = vmatprep.subr.bf16.mxu0 0
    %185 = vmatpush1.bf16.xpose.msra.mxu0 0
    %186 = vmatprep.subr.bf16.mxu0 0
    %187 = vmatpush1.bf16.xpose.msra.mxu0 0
    %188 = vmatprep.subr.bf16.mxu0 0
    %189 = vmatpush1.bf16.xpose.msra.mxu0 0
    %190 = vmatprep.subr.bf16.mxu0 0
    %191 = vmatpush1.bf16.xpose.msra.mxu0 0
    %192 = vmatprep.subr.bf16.mxu0 0
    %193 = vmatpush1.bf16.xpose.msra.mxu0 0
    %194 = vmatprep.subr.bf16.mxu0 0
    %195 = vmatpush1.bf16.xpose.msra.mxu0 0
    %196 = vmatprep.subr.bf16.mxu0 0
    %197 = vmatpush1.bf16.xpose.msra.mxu0 0
    %198 = vmatprep.subr.bf16.mxu0 0
    %199 = vmatpush1.bf16.xpose.msra.mxu0 0
    %200 = vmatprep.subr.bf16.mxu0 0
    %201 = vmatpush1.bf16.xpose.msra.mxu0 0
    %202 = vmatprep.subr.bf16.mxu0 0
    %203 = vmatpush1.bf16.xpose.msra.mxu0 0
    %204 = vmatprep.subr.bf16.mxu0 0
    %205 = vmatpush1.bf16.xpose.msra.mxu0 0
    %206 = vmatprep.subr.bf16.mxu0 0
    %207 = vmatpush1.bf16.xpose.msra.mxu0 0
    %208 = vmatprep.subr.bf16.mxu0 0
    %209 = vmatpush1.bf16.xpose.msra.mxu0 0
    %210 = vmatprep.mubr.bf16.mxu0 %v110
    %211 = vmatmul.mubr.bf16.gmra.mrb[0].mxu0 %v109
    %v212 = vpop.f32.mrb[0].mxu0
    %v213 = vadd.f32 %v173, %v212
    %v214 = vpop.f32.mrb[0].mxu0
    %v215 = vpop.f32.mrb[0].mxu0
    %v216 = vpop.f32.mrb[0].mxu0
    %217 = vdwg.mxu0
    %218 = vmatprep.subr.bf16.mxu0 %v131
    %219 = vmatpush1.bf16.xpose.msra.mxu0 %v130
    %220 = vmatprep.subr.bf16.mxu0 0
    %221 = vmatpush1.bf16.xpose.msra.mxu0 0
    %222 = vmatprep.subr.bf16.mxu0 0
    %223 = vmatpush1.bf16.xpose.msra.mxu0 0
    %224 = vmatprep.subr.bf16.mxu0 0
    %225 = vmatpush1.bf16.xpose.msra.mxu0 0
    %226 = vmatprep.subr.bf16.mxu0 0
    %227 = vmatpush1.bf16.xpose.msra.mxu0 0
    %228 = vmatprep.subr.bf16.mxu0 0
    %229 = vmatpush1.bf16.xpose.msra.mxu0 0
    %230 = vmatprep.subr.bf16.mxu0 0
    %231 = vmatpush1.bf16.xpose.msra.mxu0 0
    %232 = vmatprep.subr.bf16.mxu0 0
    %233 = vmatpush1.bf16.xpose.msra.mxu0 0
    %234 = vmatprep.subr.bf16.mxu0 0
    %235 = vmatpush1.bf16.xpose.msra.mxu0 0
    %236 = vmatprep.subr.bf16.mxu0 0
    %237 = vmatpush1.bf16.xpose.msra.mxu0 0
    %238 = vmatprep.subr.bf16.mxu0 0
    %239 = vmatpush1.bf16.xpose.msra.mxu0 0
    %240 = vmatprep.subr.bf16.mxu0 0
    %241 = vmatpush1.bf16.xpose.msra.mxu0 0
    %242 = vmatprep.subr.bf16.mxu0 0
    %243 = vmatpush1.bf16.xpose.msra.mxu0 0
    %244 = vmatprep.subr.bf16.mxu0 0
    %245 = vmatpush1.bf16.xpose.msra.mxu0 0
    %246 = vmatprep.subr.bf16.mxu0 0
    %247 = vmatpush1.bf16.xpose.msra.mxu0 0
    %248 = vmatprep.subr.bf16.mxu0 0
    %249 = vmatpush1.bf16.xpose.msra.mxu0 0
    %250 = vmatprep.mubr.bf16.mxu0 %v108
    %251 = vmatmul.mubr.bf16.gmra.mrb[0].mxu0 %v94
    %v252 = vpop.f32.mrb[0].mxu0
    %v253 = vadd.f32 %v213, %v252
    %v254 = vpop.f32.mrb[0].mxu0
    %v255 = vpop.f32.mrb[0].mxu0
    %v256 = vpop.f32.mrb[0].mxu0
    %257 = vdwg.mxu0
    %s258 = sld [smem:[#allocation8]]
    %v259 = vstv %s258
    %v260 = vadd.f32 %v253, %v259
    %s261 = sld [smem:[#allocation8 + $0x1]]
    %v262 = vstv %s261
    %v263 = vadd.f32 %v253, %v262
    %v264 = vand.u32 2147483647, %v260
    %v265 = vsub.f32 0.0, %v264
    %v266 = vmul.f32 %v265, 1.442695
    %v267 = vpow.pop %v266
    %v268 = vadd.f32 %v267, 1.0
    %v269 = vrcp.pop %v268
    %v270 = vmul.f32 1.0, %v269
    %vm271 = vcmp.ge.f32.partialorder %v260, 0.0
    %v272 = vmul.f32 %v267, %v270
    %v273 = vsel %vm271, %v270, %v272
    %v274 = vand.u32 2147483647, %v263
    %v275 = vsub.f32 0.0, %v274
    %v276 = vmul.f32 %v275, 1.442695
    %v277 = vpow.pop %v276
    %v278 = vadd.f32 %v277, 1.0
    %v279 = vrcp.pop %v278
    %v280 = vmul.f32 1.0, %v279
    %vm281 = vcmp.ge.f32.partialorder %v263, 0.0
    %v282 = vmul.f32 %v277, %v280
    %v283 = vsel %vm281, %v280, %v282
    %vm284 = vcmask 57344
    %285 = vst.msk [vmem:[#allocation9] sm:$0x1] %vm284, %v273
    %vm286 = vcmask 58369
    %287 = vst.msk [vmem:[#allocation9] sm:$0x2] %vm286, %v283
    %v288 = vld [vmem:[%s3] sm:$0x1]
    %v289 = vld [vmem:[%s3 + $0x1] sm:$0x1]
    %v290 = vmax.f32 %v260, 0.0
    %v291 = vlog2.pop %v268
    %v292 = vmul.f32 %v291, 0.6931472
    %v293 = vadd.f32 %v290, %v292
    %v294 = vmul.f32 %v288, %v260
    %v295 = vsub.f32 %v293, %v294
    %v296 = vmul.f32 %v295, %v289
    %297 = vst.msk [vmem:[#allocation10] sm:$0x1] %vm284, %v296
    // Predicated region
    $region30: #{tpu_custom_call.1} parent=1 // pred_check
      _
    $region31: #{tpu_custom_call.1} parent=1 // pred_check_branch
      %299 = sbr.rel (0) target = $region33
    $region32: #{tpu_custom_call.1} parent=1 // pred_region
      %s301 = ssub.s32 32, 32
      %302 = vsyncadd [#allocation4], %s301
      %s304 = sshll.u32 [#allocation9], 4
      %s305 = int_to_ptr.vmem [resolvable:$true] %s304
      %307 = dma.vmem_to_hbm [thread:$0]  %s305, 32, %s4, [#allocation4]
    $region33: #{tpu_custom_call.1} parent=1 // pred_fallthru
      _
    // Predicated region
    $region34: #{tpu_custom_call.1} parent=1 // pred_check
      _
    $region35: #{tpu_custom_call.1} parent=1 // pred_check_branch
      %309 = sbr.rel (0) target = $region37
    $region36: #{tpu_custom_call.1} parent=1 // pred_region
      %s311 = ssub.s32 16, 16
      %312 = vsyncadd [#allocation11], %s311
      %s314 = sshll.u32 [#allocation10], 4
      %s315 = int_to_ptr.vmem [resolvable:$true] %s314
      %317 = dma.vmem_to_hbm [thread:$0]  %s315, 16, %s5, [#allocation11]
    $region37: #{tpu_custom_call.1} parent=1 // pred_fallthru
      _
    // Predicated region
    $region38: #{tpu_custom_call.1} parent=1 // pred_check
      _
    $region39: #{tpu_custom_call.1} parent=1 // pred_check_branch
      %319 = sbr.rel (0) target = $region41
    $region40: #{tpu_custom_call.1} parent=1 // pred_region
      %320 = dma.done [#allocation4], 32
    $region41: #{tpu_custom_call.1} parent=1 // pred_fallthru
      _
    // Predicated region
    $region42: #{tpu_custom_call.1} parent=1 // pred_check
      _
    $region43: #{tpu_custom_call.1} parent=1 // pred_check_branch
      %322 = sbr.rel (0) target = $region45
    $region44: #{tpu_custom_call.1} parent=1 // pred_region
      %323 = dma.done [#allocation11], 16
    $region45: #{tpu_custom_call.1} parent=1 // pred_fallthru
      _
    %324 = vsyncpa [#allocation3], 1
    %325 = vsyncpa [#allocation7], 1
    %326 = vsyncpa [#allocation4], 1
    %327 = vsyncpa [#allocation11], 1
    %328 = vsyncpa [#allocation5], 1

</llo_original>
